<compile_context>
chip_gen: v5e
topology: v5e:2x2
jax: 0.10.0
libtpu: 0.0.40
codegen_flags: <defaults>
</compile_context>

<pallas_src>
import jax
import jax.numpy as jnp
from jax.experimental import pallas as pl
from jax.experimental.pallas import tpu as pltpu


def _updatenet_kernel(x_ref, w1_ref, b1_ref, w2_ref, b2_ref, w3_ref, o_ref):
    # x_ref : (1, Cin, thw)      io dtype (f32 or bf16)
    # w1    : (hidden, Cin)      io dtype
    # b1,b2 : (hidden, 1)        f32
    # w2    : (hidden, hidden)   io dtype
    # w3    : (Cout, hidden)     io dtype
    # o_ref : (1, Cout, thw)     io dtype
    x = x_ref[0]                                               # (Cin, thw)

    # Layer 1: conv1x1 + bias + ReLU (f32 accumulation on the MXU).
    h = jnp.dot(w1_ref[...], x, preferred_element_type=jnp.float32)
    h = jnp.maximum(h + b1_ref[...], 0.0)                      # (hidden, thw) f32

    # Layer 2: conv1x1 + bias + ReLU.
    h = jnp.dot(w2_ref[...], h.astype(w2_ref.dtype),
                preferred_element_type=jnp.float32)
    h = jnp.maximum(h + b2_ref[...], 0.0)                      # (hidden, thw) f32

    # Layer 3: conv1x1, no bias.
    o = jnp.dot(w3_ref[...], h.astype(w3_ref.dtype),
                preferred_element_type=jnp.float32)            # (Cout, thw)
    o_ref[0] = o.astype(o_ref.dtype)


def update_net_forward(x_nchw, params, *, tile_hw=4096, io_dtype=None):
    """Fused UpdateNet forward.

    x_nchw : (N, Cin, H, W)
    params : (w1 (hid,Cin), b1 (hid,1), w2 (hid,hid), b2 (hid,1), w3 (Cout,hid))
    tile_hw: spatial (lane) tile size; large tiles amortize per-step overhead.
    io_dtype: dtype of x/weights/output at the kernel boundary. Pass
              jnp.bfloat16 to halve HBM traffic (accumulation stays f32).
              None keeps the input dtype.
    """
    w1, b1, w2, b2, w3 = params
    N, Cin, H, W = x_nchw.shape
    hidden = w1.shape[0]
    Cout = w3.shape[0]
    HW = H * W

    if io_dtype is None:
        io_dtype = x_nchw.dtype

    # NCHW -> (N, Cin, H*W): contiguous reshape, no HBM transpose pass.
    x3 = x_nchw.reshape(N, Cin, HW).astype(io_dtype)
    w1c = w1.astype(io_dtype)
    w2c = w2.astype(io_dtype)
    w3c = w3.astype(io_dtype)
    b1c = b1.astype(jnp.float32)
    b2c = b2.astype(jnp.float32)

    # Spatial tile: full extent if it fits, otherwise a multiple of 128 lanes.
    if tile_hw >= HW:
        thw = HW
    else:
        thw = max(128, (tile_hw // 128) * 128)

    grid = (N, pl.cdiv(HW, thw))

    # Rough per-step VMEM footprint (double-buffered x/out tiles + two f32
    # (hidden, thw) intermediates + resident weights). Only raise the scoped
    # VMEM limit if the caller picked a huge tile.
    bytes_io = jnp.dtype(io_dtype).itemsize
    vmem_est = (2 * (Cin + Cout) * thw * bytes_io        # x/out double buffers
                + 2 * hidden * thw * 4                   # f32 intermediates
                + (hidden * Cin + hidden * hidden + Cout * hidden) * bytes_io
                + 2 * hidden * 4)
    vmem_limit = None
    if vmem_est > 24 * 1024 * 1024:
        vmem_limit = min(int(vmem_est * 2), 60 * 1024 * 1024)

    out3 = pl.pallas_call(
        _updatenet_kernel,
        out_shape=jax.ShapeDtypeStruct((N, Cout, HW), io_dtype),
        grid_spec=pltpu.PrefetchScalarGridSpec(
            num_scalar_prefetch=0,
            grid=grid,
            in_specs=[
                pl.BlockSpec((1, Cin, thw), lambda n, t: (n, 0, t)),     # x tile
                pl.BlockSpec((hidden, Cin), lambda n, t: (0, 0)),        # w1
                pl.BlockSpec((hidden, 1), lambda n, t: (0, 0)),          # b1
                pl.BlockSpec((hidden, hidden), lambda n, t: (0, 0)),     # w2
                pl.BlockSpec((hidden, 1), lambda n, t: (0, 0)),          # b2
                pl.BlockSpec((Cout, hidden), lambda n, t: (0, 0)),       # w3
            ],
            out_specs=pl.BlockSpec((1, Cout, thw), lambda n, t: (n, 0, t)),
        ),
        compiler_params=pltpu.CompilerParams(
            dimension_semantics=("parallel", "parallel"),
            vmem_limit_bytes=vmem_limit),
    )(x3, w1c, b1c, w2c, b2c, w3c)

    # (N, Cout, H*W) -> (N, Cout, H, W): contiguous reshape, free.
    return out3.reshape(N, Cout, H, W)


def init_params(key, in_channels, out_channels, hidden=64, zero_bias=True):
    """Synthetic init matching Conv2d(1x1) shapes; weights stored (out, in)."""
    k1, k2, k3 = jax.random.split(key, 3)
    w1 = jax.random.normal(k1, (hidden, in_channels), jnp.float32) * 0.1
    w2 = jax.random.normal(k2, (hidden, hidden), jnp.float32) * 0.1
    w3 = jax.random.normal(k3, (out_channels, hidden), jnp.float32) * 0.1
    if zero_bias:
        b1 = jnp.zeros((hidden, 1), jnp.float32)
        b2 = jnp.zeros((hidden, 1), jnp.float32)
    else:
        b1 = jax.random.normal(k1, (hidden, 1), jnp.float32) * 0.01
        b2 = jax.random.normal(k2, (hidden, 1), jnp.float32) * 0.01
    return (w1, b1, w2, b2, w3)


def _reference_forward(x_nchw, params):
    """Plain-JAX f32 reference of the same math."""
    w1, b1, w2, b2, w3 = params
    N, Cin, H, W = x_nchw.shape
    xr = x_nchw.reshape(N, Cin, H * W)

    def dot(a, b):
        return jnp.einsum("oi,nis->nos", a, b,
                          precision=jax.lax.Precision.HIGHEST)

    h = jnp.maximum(dot(w1, xr) + b1[None], 0.0)
    h = jnp.maximum(dot(w2, h) + b2[None], 0.0)
    o = dot(w3, h)
    return o.reshape(N, -1, H, W)


if __name__ == "__main__":
    in_channels, out_channels = 4, 8
    N, H, W = 2, 16, 16

    key = jax.random.PRNGKey(0)
    kx, kp = jax.random.split(key)
    x = jax.random.normal(kx, (N, in_channels, H, W), jnp.float32)
    params = init_params(kp, in_channels, out_channels)

    ref = _reference_forward(x, params)

    # Full-precision I/O path: tight check against the reference.
    out_f32 = jax.block_until_ready(
        update_net_forward(x, params, io_dtype=jnp.float32))
    assert out_f32.shape == (N, out_channels, H, W)
    assert jnp.allclose(out_f32, ref, atol=1e-4, rtol=1e-4)

    # bf16 I/O path (halved HBM traffic, f32 accumulation): looser tolerance.
    out_bf16 = jax.block_until_ready(
        update_net_forward(x, params, io_dtype=jnp.bfloat16))
    assert out_bf16.shape == (N, out_channels, H, W)
    assert jnp.allclose(out_bf16.astype(jnp.float32), ref, atol=3e-2, rtol=3e-2)

    # Non-divisible spatial extent (exercises the padded tail tile / multi-step
    # grid path) with a forced small tile.
    x_odd = jax.random.normal(kx, (N, in_channels, 10, 30), jnp.float32)
    ref_odd = _reference_forward(x_odd, params)
    out_odd = jax.block_until_ready(
        update_net_forward(x_odd, params, tile_hw=128, io_dtype=jnp.float32))
    assert out_odd.shape == (N, out_channels, 10, 30)
    assert jnp.allclose(out_odd, ref_odd, atol=1e-4, rtol=1e-4)

    print("KERNEL_OK")
</pallas_src>

<mosaic_0001>
module attributes {stable_mosaic.version = 11 : i64} {
  func.func @_updatenet_kernel(%arg0: i32, %arg1: i32, %arg2: memref<1x4x256xf32, #tpu.memory_space<vmem>>, %arg3: memref<64x4xf32, #tpu.memory_space<vmem>>, %arg4: memref<64x1xf32, #tpu.memory_space<vmem>>, %arg5: memref<64x64xf32, #tpu.memory_space<vmem>>, %arg6: memref<64x1xf32, #tpu.memory_space<vmem>>, %arg7: memref<8x64xf32, #tpu.memory_space<vmem>>, %arg8: memref<1x8x256xf32, #tpu.memory_space<vmem>>) attributes {dimension_semantics = [#tpu.dimension_semantics<parallel>, #tpu.dimension_semantics<parallel>], iteration_bounds = array<i64: 2, 1>, scalar_prefetch = 0 : i64, scratch_operands = 0 : i64, tpu.core_type = #tpu.core_type<tc>, window_params = [{transform_indices = @transform_0, window_bounds = array<i64: 1, 4, 256>}, {pipeline_mode = #tpu.pipeline_mode<synchronous>, transform_indices = @transform_1, window_bounds = array<i64: 64, 4>}, {pipeline_mode = #tpu.pipeline_mode<synchronous>, transform_indices = @transform_2, window_bounds = array<i64: 64, 1>}, {pipeline_mode = #tpu.pipeline_mode<synchronous>, transform_indices = @transform_3, window_bounds = array<i64: 64, 64>}, {pipeline_mode = #tpu.pipeline_mode<synchronous>, transform_indices = @transform_4, window_bounds = array<i64: 64, 1>}, {pipeline_mode = #tpu.pipeline_mode<synchronous>, transform_indices = @transform_5, window_bounds = array<i64: 8, 64>}, {transform_indices = @transform_6, window_bounds = array<i64: 1, 8, 256>}]} {
    %c0 = arith.constant 0 : index
    %c0_0 = arith.constant 0 : index
    %c0_1 = arith.constant 0 : index
    %0 = vector.load %arg2[%c0, %c0_0, %c0_1] : memref<1x4x256xf32, #tpu.memory_space<vmem>>, vector<1x4x256xf32>
    %1 = vector.shape_cast %0 : vector<1x4x256xf32> to vector<4x256xf32>
    %c0_2 = arith.constant 0 : index
    %c0_3 = arith.constant 0 : index
    %2 = vector.load %arg3[%c0_2, %c0_3] : memref<64x4xf32, #tpu.memory_space<vmem>>, vector<64x4xf32>
    %cst = arith.constant dense<0.000000e+00> : vector<64x256xf32>
    %3 = tpu.matmul %2, %1, %cst {dimension_numbers = #tpu.dot_dimension_numbers<[1], [0], [0], [1], [0, 0, 1, 1], [], []>} : vector<64x4xf32>, vector<4x256xf32>, vector<64x256xf32> -> vector<64x256xf32>
    %c0_4 = arith.constant 0 : index
    %c0_5 = arith.constant 0 : index
    %4 = vector.load %arg4[%c0_4, %c0_5] : memref<64x1xf32, #tpu.memory_space<vmem>>, vector<64x1xf32>
    %5 = vector.broadcast %4 : vector<64x1xf32> to vector<64x256xf32>
    %6 = arith.addf %3, %5 : vector<64x256xf32>
    %cst_6 = arith.constant 0.000000e+00 : f32
    %7 = vector.broadcast %cst_6 : f32 to vector<64x256xf32>
    %8 = arith.maximumf %6, %7 : vector<64x256xf32>
    %c0_7 = arith.constant 0 : index
    %c0_8 = arith.constant 0 : index
    %9 = vector.load %arg5[%c0_7, %c0_8] : memref<64x64xf32, #tpu.memory_space<vmem>>, vector<64x64xf32>
    %cst_9 = arith.constant dense<0.000000e+00> : vector<64x256xf32>
    %10 = tpu.matmul %9, %8, %cst_9 {dimension_numbers = #tpu.dot_dimension_numbers<[1], [0], [0], [1], [0, 0, 1, 1], [], []>} : vector<64x64xf32>, vector<64x256xf32>, vector<64x256xf32> -> vector<64x256xf32>
    %c0_10 = arith.constant 0 : index
    %c0_11 = arith.constant 0 : index
    %11 = vector.load %arg6[%c0_10, %c0_11] : memref<64x1xf32, #tpu.memory_space<vmem>>, vector<64x1xf32>
    %12 = vector.broadcast %11 : vector<64x1xf32> to vector<64x256xf32>
    %13 = arith.addf %10, %12 : vector<64x256xf32>
    %cst_12 = arith.constant 0.000000e+00 : f32
    %14 = vector.broadcast %cst_12 : f32 to vector<64x256xf32>
    %15 = arith.maximumf %13, %14 : vector<64x256xf32>
    %c0_13 = arith.constant 0 : index
    %c0_14 = arith.constant 0 : index
    %16 = vector.load %arg7[%c0_13, %c0_14] : memref<8x64xf32, #tpu.memory_space<vmem>>, vector<8x64xf32>
    %cst_15 = arith.constant dense<0.000000e+00> : vector<8x256xf32>
    %17 = tpu.matmul %16, %15, %cst_15 {dimension_numbers = #tpu.dot_dimension_numbers<[1], [0], [0], [1], [0, 0, 1, 1], [], []>} : vector<8x64xf32>, vector<64x256xf32>, vector<8x256xf32> -> vector<8x256xf32>
    %c0_16 = arith.constant 0 : index
    %c0_17 = arith.constant 0 : index
    %c0_18 = arith.constant 0 : index
    %18 = vector.load %arg8[%c0_16, %c0_17, %c0_18] : memref<1x8x256xf32, #tpu.memory_space<vmem>>, vector<1x8x256xf32>
    %19 = vector.shape_cast %18 : vector<1x8x256xf32> to vector<8x256xf32>
    %20 = vector.shape_cast %17 : vector<8x256xf32> to vector<1x8x256xf32>
    tpu.vector_store %arg8[%c0_16, %c0_17, %c0_18], %20 {strides = array<i32>} : memref<1x8x256xf32, #tpu.memory_space<vmem>>, vector<1x8x256xf32>,
    return
  }
  func.func @transform_0(%arg0: i32, %arg1: i32) -> (i32, i32, i32) {
    %c0_i32 = arith.constant 0 : i32
    %c0_i32_0 = arith.constant 0 : i32
    return %arg0, %c0_i32, %arg1 : i32, i32, i32
  }
  func.func @transform_1(%arg0: i32, %arg1: i32) -> (i32, i32) {
    %c0_i32 = arith.constant 0 : i32
    %c0_i32_0 = arith.constant 0 : i32
    %c0_i32_1 = arith.constant 0 : i32
    return %c0_i32, %c0_i32_0 : i32, i32
  }
  func.func @transform_2(%arg0: i32, %arg1: i32) -> (i32, i32) {
    %c0_i32 = arith.constant 0 : i32
    %c0_i32_0 = arith.constant 0 : i32
    %c0_i32_1 = arith.constant 0 : i32
    return %c0_i32, %c0_i32_0 : i32, i32
  }
  func.func @transform_3(%arg0: i32, %arg1: i32) -> (i32, i32) {
    %c0_i32 = arith.constant 0 : i32
    %c0_i32_0 = arith.constant 0 : i32
    %c0_i32_1 = arith.constant 0 : i32
    return %c0_i32, %c0_i32_0 : i32, i32
  }
  func.func @transform_4(%arg0: i32, %arg1: i32) -> (i32, i32) {
    %c0_i32 = arith.constant 0 : i32
    %c0_i32_0 = arith.constant 0 : i32
    %c0_i32_1 = arith.constant 0 : i32
    return %c0_i32, %c0_i32_0 : i32, i32
  }
  func.func @transform_5(%arg0: i32, %arg1: i32) -> (i32, i32) {
    %c0_i32 = arith.constant 0 : i32
    %c0_i32_0 = arith.constant 0 : i32
    %c0_i32_1 = arith.constant 0 : i32
    return %c0_i32, %c0_i32_0 : i32, i32
  }
  func.func @transform_6(%arg0: i32, %arg1: i32) -> (i32, i32, i32) {
    %c0_i32 = arith.constant 0 : i32
    %c0_i32_0 = arith.constant 0 : i32
    return %arg0, %c0_i32, %arg1 : i32, i32, i32
  }
}

</mosaic_0001>

<llo_original>
// kernel: tpu_custom_call.1
$region0: #{tpu_custom_call.1}
  #allocation0 [shape = 'u32[]', space=smem, size = 0x4, offset = 0x4, fixed_abs, tag = 'smem constant byte address 0x4 - core index']
  #allocation1 [shape = 'u32[72,128]{1,0:T(1,128)}', space=vmem, size = 0x9000, scoped, tag = 'internal scratch']
  %s0 = inlined_call_operand.vmem [shape: f32[2,4,256], index: 0, kind: input, shape index: {}]
  %s1 = inlined_call_operand.vmem [shape: f32[64,4], index: 1, kind: input, shape index: {}]
  %s2 = inlined_call_operand.vmem [shape: f32[64,1], index: 2, kind: input, shape index: {}]
  %s3 = inlined_call_operand.vmem [shape: f32[64,64], index: 3, kind: input, shape index: {}]
  %s4 = inlined_call_operand.vmem [shape: f32[64,1], index: 4, kind: input, shape index: {}]
  %s5 = inlined_call_operand.vmem [shape: f32[8,64], index: 5, kind: input, shape index: {}]
  %s6 = inlined_call_operand.hbm [shape: f32[2,8,256], index: 6, kind: output, shape index: {}]
  %s7 = sld [smem:[#allocation0]]
  $region57: #{tpu_custom_call.1} parent=0
    _
  %s9 = ssub.s32 1, %s7
  %s10 = scalar_select 0, %s9, %s7
  $region1: #{tpu_custom_call.1} parent=0
    #allocation2 [shape = 'u8[16384]{0}', space=vmem, size = 0x4000, scoped, tag = 'output window, operand 0']
    #allocation3 [shape = 's32[2]{0}', space=sflag, size = 0x8, scoped, tag = 'scoped memory for tpu_custom_call.1']
    %11 = vsyncpa [#allocation3], 0
    %s12 = scalar_lea.sflag [#allocation3], 1
    %13 = vsyncpa %s12, 0
    loop: start=0, step=1, limit=4
    $region2: #{tpu_custom_call.1} parent=1 // loop_pre_header
      _
    $region3: #{tpu_custom_call.1} parent=1 // loop_header
      %s15 = sphi 0, %s19
      %p16 = scmp.ge.s32.totalorder %s15, 4
      %s22 = sphi 0, %s34
      %s23 = sphi 0, %s30
      %s24 = sphi 0, %s22
      %s25 = sphi 0, %s23
      %s26 = sphi 0, %s24
      %s27 = sphi 0, %s25
      %s39 = sphi 0, %s41
      %s42 = sphi 0, %s39
      %s43 = sphi 0, %s42
      %s59 = sphi 0, %s43
      %s63 = sphi 0, %s63
      %s65 = sphi 0, %s63
      %s66 = sphi 0, %s65
      %s80 = sphi 0, %s66
      %s84 = sphi 0, %s84
      %s86 = sphi 0, %s84
      %s87 = sphi 0, %s86
      %s101 = sphi 0, %s87
      %s105 = sphi 0, %s105
      %s107 = sphi 0, %s105
      %s108 = sphi 0, %s107
      %s122 = sphi 0, %s108
      %s126 = sphi 0, %s126
      %s128 = sphi 0, %s126
      %s129 = sphi 0, %s128
      %s143 = sphi 0, %s129
      %s147 = sphi 0, %s147
      %s149 = sphi 0, %s147
      %s150 = sphi 0, %s149
      %s164 = sphi 0, %s150
      %s172 = sphi 0, %s174
      %s175 = sphi 0, %s172
      %s176 = sphi 0, %s175
      %s192 = sphi 0, %s176
    $region4: #{tpu_custom_call.1} parent=1 // loop_header_branch
      %18 = sbr.rel (%p16) target = $region8
    $region5: #{tpu_custom_call.1} parent=1 // loop_body
      %s20 = ssub.s32 %s15, 1
      %s21 = ssub.s32 %s15, 2
      %s28 = sadd.s32 1, %s23
      %p29 = scmp.ge.s32.totalorder %s28, 1
      %s30 = scalar_select %p29, 0, %s28
      %s31 = sadd.s32 1, %s22
      %s32 = scalar_select %p29, %s31, %s22
      %p33 = scmp.ge.s32.totalorder %s32, 2
      %s34 = scalar_select %p33, 0, %s32
      %s35 = ssub.s32 %s22, %s34
      %s36 = ssub.s32 %s23, %s30
      %s37 = sor.u32 %s35, %s36
      %p38 = scmp.eq.s32.totalorder %s37, 0
      %s40 = sadd.s32 %s39, 1
      %s41 = scalar_select %p38, %s39, %s40
      %p44 = pneg %p38
      %p45 = scmp.eq.s32.totalorder %s15, 1
      %p46 = por %p44, %p45
      %p47 = scmp.ne.s32.totalorder %s39, %s42
      %p48 = scmp.eq.s32.totalorder %s15, 0
      %p49 = por %p47, %p48
      %p50 = scmp.ne.s32.totalorder %s39, %s42
      %p51 = scmp.eq.s32.totalorder %s20, 1
      %p52 = por %p50, %p51
      %p53 = scmp.ne.s32.totalorder %s42, %s43
      %p54 = scmp.eq.s32.totalorder %s20, 0
      %p55 = por %p53, %p54
      %p56 = scmp.ne.s32.totalorder %s42, %s43
      %p57 = scmp.eq.s32.totalorder %s21, 1
      %p58 = por %p56, %p57
      %p60 = scmp.ne.s32.totalorder %s43, %s59
      %p61 = scmp.eq.s32.totalorder %s21, 0
      %p62 = por %p60, %p61
      %s64 = sadd.s32 %s63, 1
      %p67 = scmp.eq.s32.totalorder %s15, 1
      %p68 = scmp.ne.s32.totalorder %s63, %s65
      %p69 = scmp.eq.s32.totalorder %s15, 0
      %p70 = por %p68, %p69
      %p71 = scmp.ne.s32.totalorder %s63, %s65
      %p72 = scmp.eq.s32.totalorder %s20, 1
      %p73 = por %p71, %p72
      %p74 = scmp.ne.s32.totalorder %s65, %s66
      %p75 = scmp.eq.s32.totalorder %s20, 0
      %p76 = por %p74, %p75
      %p77 = scmp.ne.s32.totalorder %s65, %s66
      %p78 = scmp.eq.s32.totalorder %s21, 1
      %p79 = por %p77, %p78
      %p81 = scmp.ne.s32.totalorder %s66, %s80
      %p82 = scmp.eq.s32.totalorder %s21, 0
      %p83 = por %p81, %p82
      %s85 = sadd.s32 %s84, 1
      %p88 = scmp.eq.s32.totalorder %s15, 1
      %p89 = scmp.ne.s32.totalorder %s84, %s86
      %p90 = scmp.eq.s32.totalorder %s15, 0
      %p91 = por %p89, %p90
      %p92 = scmp.ne.s32.totalorder %s84, %s86
      %p93 = scmp.eq.s32.totalorder %s20, 1
      %p94 = por %p92, %p93
      %p95 = scmp.ne.s32.totalorder %s86, %s87
      %p96 = scmp.eq.s32.totalorder %s20, 0
      %p97 = por %p95, %p96
      %p98 = scmp.ne.s32.totalorder %s86, %s87
      %p99 = scmp.eq.s32.totalorder %s21, 1
      %p100 = por %p98, %p99
      %p102 = scmp.ne.s32.totalorder %s87, %s101
      %p103 = scmp.eq.s32.totalorder %s21, 0
      %p104 = por %p102, %p103
      %s106 = sadd.s32 %s105, 1
      %p109 = scmp.eq.s32.totalorder %s15, 1
      %p110 = scmp.ne.s32.totalorder %s105, %s107
      %p111 = scmp.eq.s32.totalorder %s15, 0
      %p112 = por %p110, %p111
      %p113 = scmp.ne.s32.totalorder %s105, %s107
      %p114 = scmp.eq.s32.totalorder %s20, 1
      %p115 = por %p113, %p114
      %p116 = scmp.ne.s32.totalorder %s107, %s108
      %p117 = scmp.eq.s32.totalorder %s20, 0
      %p118 = por %p116, %p117
      %p119 = scmp.ne.s32.totalorder %s107, %s108
      %p120 = scmp.eq.s32.totalorder %s21, 1
      %p121 = por %p119, %p120
      %p123 = scmp.ne.s32.totalorder %s108, %s122
      %p124 = scmp.eq.s32.totalorder %s21, 0
      %p125 = por %p123, %p124
      %s127 = sadd.s32 %s126, 1
      %p130 = scmp.eq.s32.totalorder %s15, 1
      %p131 = scmp.ne.s32.totalorder %s126, %s128
      %p132 = scmp.eq.s32.totalorder %s15, 0
      %p133 = por %p131, %p132
      %p134 = scmp.ne.s32.totalorder %s126, %s128
      %p135 = scmp.eq.s32.totalorder %s20, 1
      %p136 = por %p134, %p135
      %p137 = scmp.ne.s32.totalorder %s128, %s129
      %p138 = scmp.eq.s32.totalorder %s20, 0
      %p139 = por %p137, %p138
      %p140 = scmp.ne.s32.totalorder %s128, %s129
      %p141 = scmp.eq.s32.totalorder %s21, 1
      %p142 = por %p140, %p141
      %p144 = scmp.ne.s32.totalorder %s129, %s143
      %p145 = scmp.eq.s32.totalorder %s21, 0
      %p146 = por %p144, %p145
      %s148 = sadd.s32 %s147, 1
      %p151 = scmp.eq.s32.totalorder %s15, 1
      %p152 = scmp.ne.s32.totalorder %s147, %s149
      %p153 = scmp.eq.s32.totalorder %s15, 0
      %p154 = por %p152, %p153
      %p155 = scmp.ne.s32.totalorder %s147, %s149
      %p156 = scmp.eq.s32.totalorder %s20, 1
      %p157 = por %p155, %p156
      %p158 = scmp.ne.s32.totalorder %s149, %s150
      %p159 = scmp.eq.s32.totalorder %s20, 0
      %p160 = por %p158, %p159
      %p161 = scmp.ne.s32.totalorder %s149, %s150
      %p162 = scmp.eq.s32.totalorder %s21, 1
      %p163 = por %p161, %p162
      %p165 = scmp.ne.s32.totalorder %s150, %s164
      %p166 = scmp.eq.s32.totalorder %s21, 0
      %p167 = por %p165, %p166
      %s168 = ssub.s32 %s22, %s34
      %s169 = ssub.s32 %s23, %s30
      %s170 = sor.u32 %s168, %s169
      %p171 = scmp.eq.s32.totalorder %s170, 0
      %s173 = sadd.s32 %s172, 1
      %s174 = scalar_select %p171, %s172, %s173
      %p177 = pneg %p171
      %p178 = scmp.eq.s32.totalorder %s15, 1
      %p179 = por %p177, %p178
      %p180 = scmp.ne.s32.totalorder %s172, %s175
      %p181 = scmp.eq.s32.totalorder %s15, 0
      %p182 = por %p180, %p181
      %p183 = scmp.ne.s32.totalorder %s172, %s175
      %p184 = scmp.eq.s32.totalorder %s20, 1
      %p185 = por %p183, %p184
      %p186 = scmp.ne.s32.totalorder %s175, %s176
      %p187 = scmp.eq.s32.totalorder %s20, 0
      %p188 = por %p186, %p187
      %p189 = scmp.ne.s32.totalorder %s175, %s176
      %p190 = scmp.eq.s32.totalorder %s21, 1
      %p191 = por %p189, %p190
      %p193 = scmp.ne.s32.totalorder %s176, %s192
      %p194 = scmp.eq.s32.totalorder %s21, 0
      %p195 = por %p193, %p194
      %p196 = scmp.le.s32.totalorder 1, %s15
      %p197 = scmp.lt.s32.totalorder %s15, 3
      %p198 = pnand %p196, %p197
      %p199 = pneg %p198
      // Predicated region
      $region9: #{tpu_custom_call.1} parent=5 // pred_check
        _
      $region10: #{tpu_custom_call.1} parent=5 // pred_check_branch
        %201 = sbr.rel (%p198) target = $region12
      $region11: #{tpu_custom_call.1} parent=5 // pred_region
        %s202 = ssub.s32 %s15, 1
        // Predicated region
        $region13: #{tpu_custom_call.1} parent=11 // pred_check
          %p203 = pneg %p76
        $region14: #{tpu_custom_call.1} parent=11 // pred_check_branch
          %205 = sbr.rel (%p203) target = $region16
        $region15: #{tpu_custom_call.1} parent=11 // pred_region
          _
        $region16: #{tpu_custom_call.1} parent=11 // pred_fallthru
          _
        // Predicated region
        $region17: #{tpu_custom_call.1} parent=11 // pred_check
          %p206 = pneg %p97
        $region18: #{tpu_custom_call.1} parent=11 // pred_check_branch
          %208 = sbr.rel (%p206) target = $region20
        $region19: #{tpu_custom_call.1} parent=11 // pred_region
          _
        $region20: #{tpu_custom_call.1} parent=11 // pred_fallthru
          _
        // Predicated region
        $region21: #{tpu_custom_call.1} parent=11 // pred_check
          %p209 = pneg %p118
        $region22: #{tpu_custom_call.1} parent=11 // pred_check_branch
          %211 = sbr.rel (%p209) target = $region24
        $region23: #{tpu_custom_call.1} parent=11 // pred_region
          _
        $region24: #{tpu_custom_call.1} parent=11 // pred_fallthru
          _
        // Predicated region
        $region25: #{tpu_custom_call.1} parent=11 // pred_check
          %p212 = pneg %p139
        $region26: #{tpu_custom_call.1} parent=11 // pred_check_branch
          %214 = sbr.rel (%p212) target = $region28
        $region27: #{tpu_custom_call.1} parent=11 // pred_region
          _
        $region28: #{tpu_custom_call.1} parent=11 // pred_fallthru
          _
        // Predicated region
        $region29: #{tpu_custom_call.1} parent=11 // pred_check
          %p215 = pneg %p160
        $region30: #{tpu_custom_call.1} parent=11 // pred_check_branch
          %217 = sbr.rel (%p215) target = $region32
        $region31: #{tpu_custom_call.1} parent=11 // pred_region
          _
        $region32: #{tpu_custom_call.1} parent=11 // pred_fallthru
          _
      $region12: #{tpu_custom_call.1} parent=5 // pred_fallthru
        _
      %p218 = scmp.lt.s32.totalorder %s15, 2
      // Predicated region
      $region33: #{tpu_custom_call.1} parent=5 // pred_check
        %p219 = pneg %p218
      $region34: #{tpu_custom_call.1} parent=5 // pred_check_branch
        %221 = sbr.rel (%p219) target = $region36
      $region35: #{tpu_custom_call.1} parent=5 // pred_region
        // Predicated region
        $region37: #{tpu_custom_call.1} parent=35 // pred_check
          %p222 = pneg %p49
        $region38: #{tpu_custom_call.1} parent=35 // pred_check_branch
          %224 = sbr.rel (%p222) target = $region40
        $region39: #{tpu_custom_call.1} parent=35 // pred_region
          %s225 = smul.u32 2, %s23
          %p226 = scmp.lt.s32.totalorder %s22, 1
          %s227 = scalar_select %p226, %s22, 1
          %p228 = scmp.lt.s32.totalorder %s225, 1
          %s229 = scalar_select %p228, %s225, 1
          %s230 = smul.addr %s227, 2
          %s231 = sadd.s32 %s229, %s230
          %s232 = smul.addr %s231, 4
          %s233 = scalar_lea.vmem %s0, %s232
          %s234 = smul.u32 2, %s23
        $region40: #{tpu_custom_call.1} parent=35 // pred_fallthru
          _
      $region36: #{tpu_custom_call.1} parent=5 // pred_fallthru
        _
      %p235 = scmp.le.s32.totalorder 1, %s15
      %p236 = scmp.lt.s32.totalorder %s15, 3
      %p237 = pnand %p235, %p236
      %p238 = pneg %p237
      // Predicated region
      $region41: #{tpu_custom_call.1} parent=5 // pred_check
        _
      $region42: #{tpu_custom_call.1} parent=5 // pred_check_branch
        %240 = sbr.rel (%p237) target = $region44
      $region43: #{tpu_custom_call.1} parent=5 // pred_region
        %s241 = ssub.s32 %s15, 1
        %s242 = smul.u32 2, %s25
        %p243 = scmp.lt.s32.totalorder %s24, 1
        %s244 = scalar_select %p243, %s24, 1
        %p245 = scmp.lt.s32.totalorder %s242, 1
        %s246 = scalar_select %p245, %s242, 1
        %s247 = smul.addr %s244, 2
        %s248 = sadd.s32 %s246, %s247
        %s249 = smul.addr %s248, 4
        %s250 = scalar_lea.vmem %s0, %s249
        %p251 = pneg %p55
        %p252 = pneg %p52
        %p253 = pneg %p76
        %p254 = pneg %p73
        %p255 = pneg %p97
        %p256 = pneg %p94
        %p257 = pneg %p118
        %p258 = pneg %p115
        %p259 = pneg %p139
        %p260 = pneg %p136
        %p261 = pneg %p160
        %p262 = pneg %p157
        %p263 = pneg %p188
        %p264 = pneg %p185
        %s265 = sand.u32 %s175, 1
        %s266 = scalar_lea.sflag [#allocation3], %s265
        %s267 = sand.u32 %s175, 1
        %s268 = smul.addr %s267, 16
        %s269 = scalar_lea.vmem [#allocation2], %s268
        %s270 = smul.u32 2, %s25
        %p271 = scmp.lt.s32.totalorder %s24, 1
        %s272 = scalar_select %p271, %s24, 1
        %p273 = scmp.lt.s32.totalorder %s270, 1
        %s274 = scalar_select %p273, %s270, 1
        %s275 = smul.addr %s272, 2
        %s276 = sadd.s32 %s274, %s275
        %s277 = smul.addr %s276, 4
        %s278 = scalar_lea.vmem %s0, %s277
        %s279 = smul.u32 2, %s25
        %s280 = smul.u32 2, %s25
        %v281 = vld [vmem:[%s278] sm:$0xff]
        %v282 = vld [vmem:[%s1] sm:$0xff]
        %v283 = vld [vmem:[%s1 + $0x8] sm:$0xff]
        %v284 = vld [vmem:[%s1 + $0x10] sm:$0xff]
        %v285 = vld [vmem:[%s1 + $0x18] sm:$0xff]
        %v286 = vld [vmem:[%s1 + $0x20] sm:$0xff]
        %v287 = vld [vmem:[%s1 + $0x28] sm:$0xff]
        %v288 = vld [vmem:[%s1 + $0x30] sm:$0xff]
        %v289 = vld [vmem:[%s1 + $0x38] sm:$0xff]
        %v290 = vld [vmem:[%s2] sm:$0xff]
        %v291 = vld [vmem:[%s2 + $0x8] sm:$0xff]
        %v292 = vld [vmem:[%s2 + $0x10] sm:$0xff]
        %v293 = vld [vmem:[%s2 + $0x18] sm:$0xff]
        %v294 = vld [vmem:[%s2 + $0x20] sm:$0xff]
        %v295 = vld [vmem:[%s2 + $0x28] sm:$0xff]
        %v296 = vld [vmem:[%s2 + $0x30] sm:$0xff]
        %v297 = vld [vmem:[%s2 + $0x38] sm:$0xff]
        %299 = vset.pattern.permute.xlu0 0
        %300 = vperm.xlu0 %299, %v290
        %v301 = vpop.permute.xlu0 %300
        %304 = vset.pattern.permute.xlu0 0
        %305 = vperm.xlu0 %304, %v291
        %v306 = vpop.permute.xlu0 %305
        %309 = vset.pattern.permute.xlu0 0
        %310 = vperm.xlu0 %309, %v292
        %v311 = vpop.permute.xlu0 %310
        %314 = vset.pattern.permute.xlu0 0
        %315 = vperm.xlu0 %314, %v293
        %v316 = vpop.permute.xlu0 %315
        %319 = vset.pattern.permute.xlu0 0
        %320 = vperm.xlu0 %319, %v294
        %v321 = vpop.permute.xlu0 %320
        %324 = vset.pattern.permute.xlu0 0
        %325 = vperm.xlu0 %324, %v295
        %v326 = vpop.permute.xlu0 %325
        %329 = vset.pattern.permute.xlu0 0
        %330 = vperm.xlu0 %329, %v296
        %v331 = vpop.permute.xlu0 %330
        %334 = vset.pattern.permute.xlu0 0
        %335 = vperm.xlu0 %334, %v297
        %v336 = vpop.permute.xlu0 %335
        %339 = vst [vmem:[#allocation1] ss:$2 sm:$0xff] %v281
        %v340 = vld.sshfl [vmem:[#allocation1] sm:$0xff pattern:$0x75316420]
        %v341 = vld.sshfl [vmem:[#allocation1 + $0x8] sm:$0xff pattern:$0x75316420]
        %vm342 = vcmask 31744
        %v344 = vsel %vm342, %v282, 0
        %v347 = vsel %vm342, %v283, 0
        %v350 = vsel %vm342, %v284, 0
        %v353 = vsel %vm342, %v285, 0
        %v356 = vsel %vm342, %v286, 0
        %v359 = vsel %vm342, %v287, 0
        %v362 = vsel %vm342, %v288, 0
        %v365 = vsel %vm342, %v289, 0
        %vm367 = vcmask 1043456
        %v368 = vsel %vm367, %v340, 0
        %v370 = vsel %vm367, %v341, 0
        %372 = vmatpush.msra.mxu0 0.0
        %373 = vmatpush.msra.mxu0 0.0
        %374 = vmatpush.msra.mxu0 0.0
        %375 = vmatpush.msra.mxu0 0.0
        %376 = vmatpush.msra.mxu0 0.0
        %377 = vmatpush.msra.mxu0 0.0
        %378 = vmatpush.msra.mxu0 0.0
        %379 = vmatpush.msra.mxu0 0.0
        %380 = vmatpush.msra.mxu0 0.0
        %381 = vmatpush.msra.mxu0 0.0
        %382 = vmatpush.msra.mxu0 0.0
        %383 = vmatpush.msra.mxu0 0.0
        %384 = vmatpush.msra.mxu0 0.0
        %385 = vmatpush.msra.mxu0 0.0
        %386 = vmatpush.msra.mxu0 0.0
        %387 = vmatpush.msra.mxu0 %v368
        %388 = vmatmul.f32.gmra.mxu0 %v344
        %v389 = vpop.f32.mrf.mxu0
        %v390 = vadd.f32 %v301, %v389
        %391 = vmatmul.f32.gmra.mxu0 %v347
        %v392 = vpop.f32.mrf.mxu0
        %v393 = vadd.f32 %v306, %v392
        %394 = vmatmul.f32.gmra.mxu0 %v350
        %v395 = vpop.f32.mrf.mxu0
        %v396 = vadd.f32 %v311, %v395
        %397 = vmatmul.f32.gmra.mxu0 %v353
        %v398 = vpop.f32.mrf.mxu0
        %v399 = vadd.f32 %v316, %v398
        %400 = vmatmul.f32.gmra.mxu0 %v356
        %v401 = vpop.f32.mrf.mxu0
        %v402 = vadd.f32 %v321, %v401
        %403 = vmatmul.f32.gmra.mxu0 %v359
        %v404 = vpop.f32.mrf.mxu0
        %v405 = vadd.f32 %v326, %v404
        %406 = vmatmul.f32.gmra.mxu0 %v362
        %v407 = vpop.f32.mrf.mxu0
        %v408 = vadd.f32 %v331, %v407
        %409 = vmatmul.f32.gmra.mxu0 %v365
        %v410 = vpop.f32.mrf.mxu0
        %v411 = vadd.f32 %v336, %v410
        %412 = vdwg.mxu0
        %413 = vmatpush.msra.mxu0 0.0
        %414 = vmatpush.msra.mxu0 0.0
        %415 = vmatpush.msra.mxu0 0.0
        %416 = vmatpush.msra.mxu0 0.0
        %417 = vmatpush.msra.mxu0 0.0
        %418 = vmatpush.msra.mxu0 0.0
        %419 = vmatpush.msra.mxu0 0.0
        %420 = vmatpush.msra.mxu0 0.0
        %421 = vmatpush.msra.mxu0 0.0
        %422 = vmatpush.msra.mxu0 0.0
        %423 = vmatpush.msra.mxu0 0.0
        %424 = vmatpush.msra.mxu0 0.0
        %425 = vmatpush.msra.mxu0 0.0
        %426 = vmatpush.msra.mxu0 0.0
        %427 = vmatpush.msra.mxu0 0.0
        %428 = vmatpush.msra.mxu0 %v370
        %429 = vmatmul.f32.gmra.mxu0 %v344
        %v430 = vpop.f32.mrf.mxu0
        %v431 = vadd.f32 %v301, %v430
        %432 = vmatmul.f32.gmra.mxu0 %v347
        %v433 = vpop.f32.mrf.mxu0
        %v434 = vadd.f32 %v306, %v433
        %435 = vmatmul.f32.gmra.mxu0 %v350
        %v436 = vpop.f32.mrf.mxu0
        %v437 = vadd.f32 %v311, %v436
        %438 = vmatmul.f32.gmra.mxu0 %v353
        %v439 = vpop.f32.mrf.mxu0
        %v440 = vadd.f32 %v316, %v439
        %441 = vmatmul.f32.gmra.mxu0 %v356
        %v442 = vpop.f32.mrf.mxu0
        %v443 = vadd.f32 %v321, %v442
        %444 = vmatmul.f32.gmra.mxu0 %v359
        %v445 = vpop.f32.mrf.mxu0
        %v446 = vadd.f32 %v326, %v445
        %447 = vmatmul.f32.gmra.mxu0 %v362
        %v448 = vpop.f32.mrf.mxu0
        %v449 = vadd.f32 %v331, %v448
        %450 = vmatmul.f32.gmra.mxu0 %v365
        %v451 = vpop.f32.mrf.mxu0
        %v452 = vadd.f32 %v336, %v451
        %453 = vdwg.mxu0
        %v454 = vmax.f32 %v390, 0.0
        %v455 = vmax.f32 %v431, 0.0
        %v456 = vmax.f32 %v393, 0.0
        %v457 = vmax.f32 %v434, 0.0
        %v458 = vmax.f32 %v396, 0.0
        %v459 = vmax.f32 %v437, 0.0
        %v460 = vmax.f32 %v399, 0.0
        %v461 = vmax.f32 %v440, 0.0
        %v462 = vmax.f32 %v402, 0.0
        %v463 = vmax.f32 %v443, 0.0
        %v464 = vmax.f32 %v405, 0.0
        %v465 = vmax.f32 %v446, 0.0
        %v466 = vmax.f32 %v408, 0.0
        %v467 = vmax.f32 %v449, 0.0
        %v468 = vmax.f32 %v411, 0.0
        %v469 = vmax.f32 %v452, 0.0
        %v470 = vld [vmem:[%s3] sm:$0xff]
        %v471 = vld [vmem:[%s3 + $0x8] sm:$0xff]
        %v472 = vld [vmem:[%s3 + $0x10] sm:$0xff]
        %v473 = vld [vmem:[%s3 + $0x18] sm:$0xff]
        %v474 = vld [vmem:[%s3 + $0x20] sm:$0xff]
        %v475 = vld [vmem:[%s3 + $0x28] sm:$0xff]
        %v476 = vld [vmem:[%s3 + $0x30] sm:$0xff]
        %v477 = vld [vmem:[%s3 + $0x38] sm:$0xff]
        %v478 = vld [vmem:[%s4] sm:$0xff]
        %v479 = vld [vmem:[%s4 + $0x8] sm:$0xff]
        %v480 = vld [vmem:[%s4 + $0x10] sm:$0xff]
        %v481 = vld [vmem:[%s4 + $0x18] sm:$0xff]
        %v482 = vld [vmem:[%s4 + $0x20] sm:$0xff]
        %v483 = vld [vmem:[%s4 + $0x28] sm:$0xff]
        %v484 = vld [vmem:[%s4 + $0x30] sm:$0xff]
        %v485 = vld [vmem:[%s4 + $0x38] sm:$0xff]
        %487 = vset.pattern.permute.xlu0 0
        %488 = vperm.xlu0 %487, %v478
        %v489 = vpop.permute.xlu0 %488
        %492 = vset.pattern.permute.xlu0 0
        %493 = vperm.xlu0 %492, %v479
        %v494 = vpop.permute.xlu0 %493
        %497 = vset.pattern.permute.xlu0 0
        %498 = vperm.xlu0 %497, %v480
        %v499 = vpop.permute.xlu0 %498
        %502 = vset.pattern.permute.xlu0 0
        %503 = vperm.xlu0 %502, %v481
        %v504 = vpop.permute.xlu0 %503
        %507 = vset.pattern.permute.xlu0 0
        %508 = vperm.xlu0 %507, %v482
        %v509 = vpop.permute.xlu0 %508
        %512 = vset.pattern.permute.xlu0 0
        %513 = vperm.xlu0 %512, %v483
        %v514 = vpop.permute.xlu0 %513
        %517 = vset.pattern.permute.xlu0 0
        %518 = vperm.xlu0 %517, %v484
        %v519 = vpop.permute.xlu0 %518
        %522 = vset.pattern.permute.xlu0 0
        %523 = vperm.xlu0 %522, %v485
        %v524 = vpop.permute.xlu0 %523
        %vm526 = vcmask 523264
        %v528 = vsel %vm526, %v470, 0
        %v531 = vsel %vm526, %v471, 0
        %v534 = vsel %vm526, %v472, 0
        %v537 = vsel %vm526, %v473, 0
        %v540 = vsel %vm526, %v474, 0
        %v543 = vsel %vm526, %v475, 0
        %v546 = vsel %vm526, %v476, 0
        %v549 = vsel %vm526, %v477, 0
        %551 = vmatpush.msra.mxu0 0.0
        %552 = vmatpush.msra.mxu0 0.0
        %553 = vmatpush.msra.mxu0 0.0
        %554 = vmatpush.msra.mxu0 0.0
        %555 = vmatpush.msra.mxu0 0.0
        %556 = vmatpush.msra.mxu0 0.0
        %557 = vmatpush.msra.mxu0 0.0
        %558 = vmatpush.msra.mxu0 0.0
        %559 = vmatpush.msra.mxu0 %v468
        %560 = vmatpush.msra.mxu0 %v466
        %561 = vmatpush.msra.mxu0 %v464
        %562 = vmatpush.msra.mxu0 %v462
        %563 = vmatpush.msra.mxu0 %v460
        %564 = vmatpush.msra.mxu0 %v458
        %565 = vmatpush.msra.mxu0 %v456
        %566 = vmatpush.msra.mxu0 %v454
        %567 = vmatmul.f32.gmra.mxu0 %v528
        %v568 = vpop.f32.mrf.mxu0
        %v569 = vadd.f32 %v489, %v568
        %570 = vmatmul.f32.gmra.mxu0 %v531
        %v571 = vpop.f32.mrf.mxu0
        %v572 = vadd.f32 %v494, %v571
        %573 = vmatmul.f32.gmra.mxu0 %v534
        %v574 = vpop.f32.mrf.mxu0
        %v575 = vadd.f32 %v499, %v574
        %576 = vmatmul.f32.gmra.mxu0 %v537
        %v577 = vpop.f32.mrf.mxu0
        %v578 = vadd.f32 %v504, %v577
        %579 = vmatmul.f32.gmra.mxu0 %v540
        %v580 = vpop.f32.mrf.mxu0
        %v581 = vadd.f32 %v509, %v580
        %582 = vmatmul.f32.gmra.mxu0 %v543
        %v583 = vpop.f32.mrf.mxu0
        %v584 = vadd.f32 %v514, %v583
        %585 = vmatmul.f32.gmra.mxu0 %v546
        %v586 = vpop.f32.mrf.mxu0
        %v587 = vadd.f32 %v519, %v586
        %588 = vmatmul.f32.gmra.mxu0 %v549
        %v589 = vpop.f32.mrf.mxu0
        %v590 = vadd.f32 %v524, %v589
        %591 = vdwg.mxu0
        %592 = vmatpush.msra.mxu0 0.0
        %593 = vmatpush.msra.mxu0 0.0
        %594 = vmatpush.msra.mxu0 0.0
        %595 = vmatpush.msra.mxu0 0.0
        %596 = vmatpush.msra.mxu0 0.0
        %597 = vmatpush.msra.mxu0 0.0
        %598 = vmatpush.msra.mxu0 0.0
        %599 = vmatpush.msra.mxu0 0.0
        %600 = vmatpush.msra.mxu0 %v469
        %601 = vmatpush.msra.mxu0 %v467
        %602 = vmatpush.msra.mxu0 %v465
        %603 = vmatpush.msra.mxu0 %v463
        %604 = vmatpush.msra.mxu0 %v461
        %605 = vmatpush.msra.mxu0 %v459
        %606 = vmatpush.msra.mxu0 %v457
        %607 = vmatpush.msra.mxu0 %v455
        %608 = vmatmul.f32.gmra.mxu0 %v528
        %v609 = vpop.f32.mrf.mxu0
        %v610 = vadd.f32 %v489, %v609
        %611 = vmatmul.f32.gmra.mxu0 %v531
        %v612 = vpop.f32.mrf.mxu0
        %v613 = vadd.f32 %v494, %v612
        %614 = vmatmul.f32.gmra.mxu0 %v534
        %v615 = vpop.f32.mrf.mxu0
        %v616 = vadd.f32 %v499, %v615
        %617 = vmatmul.f32.gmra.mxu0 %v537
        %v618 = vpop.f32.mrf.mxu0
        %v619 = vadd.f32 %v504, %v618
        %620 = vmatmul.f32.gmra.mxu0 %v540
        %v621 = vpop.f32.mrf.mxu0
        %v622 = vadd.f32 %v509, %v621
        %623 = vmatmul.f32.gmra.mxu0 %v543
        %v624 = vpop.f32.mrf.mxu0
        %v625 = vadd.f32 %v514, %v624
        %626 = vmatmul.f32.gmra.mxu0 %v546
        %v627 = vpop.f32.mrf.mxu0
        %v628 = vadd.f32 %v519, %v627
        %629 = vmatmul.f32.gmra.mxu0 %v549
        %v630 = vpop.f32.mrf.mxu0
        %v631 = vadd.f32 %v524, %v630
        %632 = vdwg.mxu0
        %v633 = vmax.f32 %v569, 0.0
        %v634 = vmax.f32 %v610, 0.0
        %v635 = vmax.f32 %v572, 0.0
        %v636 = vmax.f32 %v613, 0.0
        %v637 = vmax.f32 %v575, 0.0
        %v638 = vmax.f32 %v616, 0.0
        %v639 = vmax.f32 %v578, 0.0
        %v640 = vmax.f32 %v619, 0.0
        %v641 = vmax.f32 %v581, 0.0
        %v642 = vmax.f32 %v622, 0.0
        %v643 = vmax.f32 %v584, 0.0
        %v644 = vmax.f32 %v625, 0.0
        %v645 = vmax.f32 %v587, 0.0
        %v646 = vmax.f32 %v628, 0.0
        %v647 = vmax.f32 %v590, 0.0
        %v648 = vmax.f32 %v631, 0.0
        %v649 = vld [vmem:[%s5] sm:$0xff]
        %v651 = vsel %vm526, %v649, 0
        %653 = vmatpush.msra.mxu0 0.0
        %654 = vmatpush.msra.mxu0 0.0
        %655 = vmatpush.msra.mxu0 0.0
        %656 = vmatpush.msra.mxu0 0.0
        %657 = vmatpush.msra.mxu0 0.0
        %658 = vmatpush.msra.mxu0 0.0
        %659 = vmatpush.msra.mxu0 0.0
        %660 = vmatpush.msra.mxu0 0.0
        %661 = vmatpush.msra.mxu0 %v647
        %662 = vmatpush.msra.mxu0 %v645
        %663 = vmatpush.msra.mxu0 %v643
        %664 = vmatpush.msra.mxu0 %v641
        %665 = vmatpush.msra.mxu0 %v639
        %666 = vmatpush.msra.mxu0 %v637
        %667 = vmatpush.msra.mxu0 %v635
        %668 = vmatpush.msra.mxu0 %v633
        %669 = vmatmul.f32.gmra.mxu0 %v651
        %v670 = vpop.f32.mrf.mxu0
        %v671 = vadd.f32 0.0, %v670
        %672 = vdwg.mxu0
        %673 = vmatpush.msra.mxu0 0.0
        %674 = vmatpush.msra.mxu0 0.0
        %675 = vmatpush.msra.mxu0 0.0
        %676 = vmatpush.msra.mxu0 0.0
        %677 = vmatpush.msra.mxu0 0.0
        %678 = vmatpush.msra.mxu0 0.0
        %679 = vmatpush.msra.mxu0 0.0
        %680 = vmatpush.msra.mxu0 0.0
        %681 = vmatpush.msra.mxu0 %v648
        %682 = vmatpush.msra.mxu0 %v646
        %683 = vmatpush.msra.mxu0 %v644
        %684 = vmatpush.msra.mxu0 %v642
        %685 = vmatpush.msra.mxu0 %v640
        %686 = vmatpush.msra.mxu0 %v638
        %687 = vmatpush.msra.mxu0 %v636
        %688 = vmatpush.msra.mxu0 %v634
        %689 = vmatmul.f32.gmra.mxu0 %v651
        %v690 = vpop.f32.mrf.mxu0
        %v691 = vadd.f32 0.0, %v690
        %692 = vdwg.mxu0
        %693 = vst [vmem:[%s269] sm:$0xff] %v671
        %694 = vst [vmem:[%s269 + $0x8] sm:$0xff] %v691
        %s695 = sand.u32 %s175, 1
        %s696 = scalar_lea.sflag [#allocation3], %s695
        %s697 = sand.u32 %s175, 1
        %s698 = smul.addr %s697, 16
        %s699 = scalar_lea.vmem [#allocation2], %s698
        // Predicated region
        $region45: #{tpu_custom_call.1} parent=43 // pred_check
          %p700 = pneg %p185
        $region46: #{tpu_custom_call.1} parent=43 // pred_check_branch
          %702 = sbr.rel (%p700) target = $region48
        $region47: #{tpu_custom_call.1} parent=43 // pred_region
          %s703 = smul.u32 2, %s25
          %705 = vsyncadd %s696, 0
          %s706 = smul.addr %s24, 2
          %s707 = sadd.s32 %s703, %s706
          %s708 = smul.addr %s707, 8
          %s709 = scalar_lea.hbm %s6, %s708
          %s711 = sshll.u32 %s699, 4
          %s712 = int_to_ptr.vmem [resolvable:$true] %s711
          %s713 = sshll.u32 %s709, 4
          %s714 = int_to_ptr.hbm [resolvable:$true] %s713
          %716 = dma.vmem_to_hbm [thread:$0]  %s712, 256, %s714, %s696
        $region48: #{tpu_custom_call.1} parent=43 // pred_fallthru
          _
      $region44: #{tpu_custom_call.1} parent=5 // pred_fallthru
        _
      %p717 = scmp.le.s32.totalorder 2, %s15
      // Predicated region
      $region49: #{tpu_custom_call.1} parent=5 // pred_check
        %p718 = pneg %p717
      $region50: #{tpu_custom_call.1} parent=5 // pred_check_branch
        %720 = sbr.rel (%p718) target = $region52
      $region51: #{tpu_custom_call.1} parent=5 // pred_region
        %s721 = ssub.s32 %s15, 2
        // Predicated region
        $region53: #{tpu_custom_call.1} parent=51 // pred_check
          %p722 = pneg %p191
        $region54: #{tpu_custom_call.1} parent=51 // pred_check_branch
          %724 = sbr.rel (%p722) target = $region56
        $region55: #{tpu_custom_call.1} parent=51 // pred_region
          %s725 = sand.u32 %s176, 1
          %s726 = scalar_lea.sflag [#allocation3], %s725
          %s727 = sand.u32 %s176, 1
          %s728 = smul.addr %s727, 16
          %s729 = scalar_lea.vmem [#allocation2], %s728
          %731 = dma.done %s726, 256
        $region56: #{tpu_custom_call.1} parent=51 // pred_fallthru
          _
      $region52: #{tpu_custom_call.1} parent=5 // pred_fallthru
        _
    $region6: #{tpu_custom_call.1} parent=1 // loop_footer
      %s19 = sadd.s32 1, %s15
    $region7: #{tpu_custom_call.1} parent=1 // loop_footer_branch
      %14 = sbr.rel target = $region3
    $region8: #{tpu_custom_call.1} parent=1 // loop_exit
      _
    %732 = vsyncpa [#allocation3], 1
    %s733 = scalar_lea.sflag [#allocation3], 1
    %734 = vsyncpa %s733, 1

</llo_original>
